<compile_context>
chip_gen: v7x
topology: tpu7x:2x2x1
jax: 0.10.0
libtpu: 0.0.40
codegen_flags: <defaults>
</compile_context>

<pallas_src>
import functools

import jax
import jax.numpy as jnp
from jax.experimental import pallas as pl
from jax.experimental.pallas import tpu as pltpu

EPSILON = 1e-7
CLASSES = 9


def _lane_fold_128(x):
    """Sum a (c, k*128) array down to (c, 128) with 128-aligned pairwise folds.

    Pure VPU adds (lane-tile aligned slices), no XLU cross-lane reduction.
    """
    k = x.shape[1] // 128
    carry = None
    while k > 1:
        if k % 2:                       # peel the odd trailing lane-tile
            tail = x[:, (k - 1) * 128:]
            x = x[:, :(k - 1) * 128]
            carry = tail if carry is None else carry + tail
            k -= 1
        half = (k // 2) * 128
        x = x[:, :half] + x[:, half:]
        k //= 2
    return x if carry is None else x + carry


def _f1_partials_kernel(slab_ref, o_ref, *, classes):
    """Accumulate per-class [tp, softmax-mass, label-count] partial sums.

    slab_ref: (classes + 1, TN) f32.  Rows 0..classes-1 are logits (lane-dense,
              batch on lanes); row `classes` holds int32 labels bitcast to f32
              (padded columns carry label -1).
    o_ref:    (1, 3, classes, 128) f32 accumulator, resident across the inner
              ("arbitrary") grid axis; one block per TensorCore.
    """
    step = pl.program_id(1)

    @pl.when(step == 0)
    def _init():
        o_ref[...] = jnp.zeros_like(o_ref)

    pred = slab_ref[pl.ds(0, classes), :]                            # (C, TN)
    labs = pltpu.bitcast(slab_ref[pl.ds(classes, 1), :], jnp.int32)  # (1, TN)

    # Padded columns were written with label -1 and logits 0 by the wrapper
    # (no OOB garbage is ever DMA'd), so validity folds into one (1, TN)
    # compare that zeroes the softmax reciprocal for padded columns.
    valid_f = (labs >= 0).astype(jnp.float32)                        # (1, TN)

    # Softmax over the class (sublane) axis, per batch column.
    m = jnp.max(pred, axis=0, keepdims=True)                         # (1, TN)
    e = jnp.exp(pred - m)                                            # (C, TN)
    denom = jnp.sum(e, axis=0, keepdims=True)                        # (1, TN)
    inv = pl.reciprocal(denom, approx=True) * valid_f                # (1, TN)
    sm = e * inv                                                     # (C, TN)

    # one-hot(y_true) from a sublane iota compare; label -1 never matches.
    row = jax.lax.broadcasted_iota(jnp.int32, pred.shape, 0)
    oh = (row == labs).astype(jnp.float32)                           # (C, TN)

    # Lane-wide (C, 128) partial sums; final cross-lane reduce happens in JAX.
    o_ref[0, 0, :, :] = o_ref[0, 0, :, :] + _lane_fold_128(oh * sm)  # tp
    o_ref[0, 1, :, :] = o_ref[0, 1, :, :] + _lane_fold_128(sm)       # tp + fp
    o_ref[0, 2, :, :] = o_ref[0, 2, :, :] + _lane_fold_128(oh)       # tp + fn


def f1_loss(y_pred, y_true, classes=CLASSES, epsilon=EPSILON, block_n=32768):
    """Soft macro-F1 loss (1 - mean F1), matching the PyTorch F1Loss module.

    block_n: target batch-tile width in lanes (rounded to a multiple of 128).
    32768 is safe on v5e; 65536 also works on v6e/v7x.
    """
    assert y_pred.ndim == 2
    assert y_true.ndim == 1
    n, c = y_pred.shape
    assert c == classes and n >= 1

    # ---- tiling ------------------------------------------------------------
    block_n = max(128, (block_n // 128) * 128)
    n128 = 128 * pl.cdiv(n, 128)
    num_blocks = pl.cdiv(n128, block_n)
    # Shard column blocks across the two v7x TensorCores when there is enough
    # work (sequential and harmless on single-core v5e/v6e).
    n_cores = 2 if num_blocks >= 4 else 1
    steps = pl.cdiv(num_blocks, n_cores)
    total_blocks = n_cores * steps
    # Re-derive the tile so the padded batch splits exactly into total_blocks
    # tiles (padding stays < 128 lanes per tile instead of whole dead blocks).
    tn = 128 * pl.cdiv(n128, 128 * total_blocks)
    n_pad = tn * total_blocks

    # ---- single fused input slab: (classes + 1, n_pad) f32 ------------------
    # rows 0..C-1: logits (lane-dense, batch on lanes); row C: labels bitcast
    # to f32.  Padding columns: logits 0, label -1 (excluded in-kernel).
    pred_t = jnp.pad(y_pred.astype(jnp.float32).T, ((0, 0), (0, n_pad - n)))
    labs = jnp.pad(y_true.astype(jnp.int32), (0, n_pad - n), constant_values=-1)
    lab_row = jax.lax.bitcast_convert_type(labs, jnp.float32).reshape(1, n_pad)
    slab = jnp.concatenate([pred_t, lab_row], axis=0)

    kernel = functools.partial(_f1_partials_kernel, classes=classes)
    partials = pl.pallas_call(
        kernel,
        out_shape=jax.ShapeDtypeStruct((n_cores, 3, classes, 128), jnp.float32),
        grid_spec=pltpu.PrefetchScalarGridSpec(
            num_scalar_prefetch=0,
            grid=(n_cores, steps),
            in_specs=[
                pl.BlockSpec((classes + 1, tn),
                             lambda core, i: (0, core * steps + i)),
            ],
            out_specs=pl.BlockSpec((1, 3, classes, 128),
                                   lambda core, i: (core, 0, 0, 0)),
        ),
        compiler_params=pltpu.CompilerParams(
            dimension_semantics=("parallel", "arbitrary"),
            vmem_limit_bytes=32 * 1024 * 1024,
            allow_input_fusion=[True],
        ),
    )(slab)

    # ---- tiny finalize in plain JAX (3 * classes * 128 partial sums) --------
    sums = jnp.sum(partials, axis=(0, 3))              # (3, classes)
    tp, mass, cnt = sums[0], sums[1], sums[2]
    precision = tp / (mass + epsilon)                  # tp / (tp + fp + eps)
    recall = tp / (cnt + epsilon)                      # tp / (tp + fn + eps)
    f1 = 2.0 * precision * recall / (precision + recall + epsilon)
    f1 = jnp.clip(f1, epsilon, 1.0 - epsilon)
    return 1.0 - jnp.mean(f1)


def f1_loss_ref(y_pred, y_true, classes=CLASSES, epsilon=EPSILON):
    """Pure-JAX reference mirroring the PyTorch module."""
    y_true_oh = jax.nn.one_hot(y_true, classes, dtype=jnp.float32)
    p = jax.nn.softmax(y_pred.astype(jnp.float32), axis=1)
    tp = jnp.sum(y_true_oh * p, axis=0)
    fp = jnp.sum((1.0 - y_true_oh) * p, axis=0)
    fn = jnp.sum(y_true_oh * (1.0 - p), axis=0)
    precision = tp / (tp + fp + epsilon)
    recall = tp / (tp + fn + epsilon)
    f1 = 2.0 * precision * recall / (precision + recall + epsilon)
    f1 = jnp.clip(f1, epsilon, 1.0 - epsilon)
    return 1.0 - jnp.mean(f1)


if __name__ == "__main__":
    base_key = jax.random.PRNGKey(0)

    def check(n, block_n, case):
        kp, kl = jax.random.split(jax.random.fold_in(base_key, case))
        yp = jax.random.normal(kp, (n, CLASSES), dtype=jnp.float32)
        yt = jax.random.randint(kl, (n,), 0, CLASSES, dtype=jnp.int32)
        got = jax.block_until_ready(f1_loss(yp, yt, block_n=block_n))
        ref = jax.block_until_ready(f1_loss_ref(yp, yt))
        assert jnp.allclose(got, ref, atol=2e-3, rtol=2e-3), \
            (n, block_n, got, ref)

    # Case 1: tiny batch -> single, heavily padded tile.
    check(n=8, block_n=32768, case=0)
    # Case 2: two column blocks, odd lane-tile count in the fold, padded tail.
    check(n=700, block_n=384, case=1)
    # Case 3: enough blocks to trigger the dual-TensorCore "parallel" split.
    check(n=1000, block_n=128, case=2)

    print("KERNEL_OK")
</pallas_src>

<mosaic_0001>
module attributes {stable_mosaic.version = 11 : i64} {
  func.func @_f1_partials_kernel(%arg0: i32, %arg1: i32, %arg2: memref<10x128xf32, #tpu.memory_space<vmem>>, %arg3: memref<1x3x9x128xf32, #tpu.memory_space<vmem>>) attributes {dimension_semantics = [#tpu.dimension_semantics<parallel>, #tpu.dimension_semantics<arbitrary>], iteration_bounds = array<i64: 1, 1>, scalar_prefetch = 0 : i64, scratch_operands = 0 : i64, tpu.core_type = #tpu.core_type<tc>, window_params = [{transform_indices = @transform_0, window_bounds = array<i64: 10, 128>}, {transform_indices = @transform_1, window_bounds = array<i64: 1, 3, 9, 128>}]} {
    %c0_i32 = arith.constant 0 : i32
    %0 = arith.cmpi eq, %arg1, %c0_i32 : i32
    %1 = arith.extui %0 : i1 to i32
    %c0_i32_0 = arith.constant 0 : i32
    %2 = arith.cmpi ne, %1, %c0_i32_0 : i32
    scf.if %2 {
      %cst_27 = arith.constant 0.000000e+00 : f32
      %45 = vector.broadcast %cst_27 : f32 to vector<1x3x9x128xf32>
      %c0_28 = arith.constant 0 : index
      %c0_29 = arith.constant 0 : index
      %c0_30 = arith.constant 0 : index
      %c0_31 = arith.constant 0 : index
      %46 = vector.load %arg3[%c0_28, %c0_29, %c0_30, %c0_31] : memref<1x3x9x128xf32, #tpu.memory_space<vmem>>, vector<1x3x9x128xf32>
      tpu.vector_store %arg3[%c0_28, %c0_29, %c0_30, %c0_31], %45 {strides = array<i32>} : memref<1x3x9x128xf32, #tpu.memory_space<vmem>>, vector<1x3x9x128xf32>,
    } else {
    }
    %c0 = arith.constant 0 : index
    %c0_1 = arith.constant 0 : index
    %3 = vector.load %arg2[%c0, %c0_1] : memref<10x128xf32, #tpu.memory_space<vmem>>, vector<9x128xf32>
    %c9 = arith.constant 9 : index
    %c0_2 = arith.constant 0 : index
    %4 = vector.load %arg2[%c9, %c0_2] : memref<10x128xf32, #tpu.memory_space<vmem>>, vector<1x128xf32>
    %5 = tpu.bitcast %4 : vector<1x128xf32> -> vector<1x128xi32>
    %c0_i32_3 = arith.constant 0 : i32
    %6 = vector.broadcast %c0_i32_3 : i32 to vector<1x128xi32>
    %7 = arith.cmpi sge, %5, %6 : vector<1x128xi32>
    %8 = arith.extui %7 : vector<1x128xi1> to vector<1x128xi32>
    %9 = arith.sitofp %8 : vector<1x128xi32> to vector<1x128xf32>
    %cst = arith.constant dense<0xFF800000> : vector<128xf32>
    %10 = vector.multi_reduction <maximumf>, %3, %cst [0] : vector<9x128xf32> to vector<128xf32>
    %11 = vector.shape_cast %10 : vector<128xf32> to vector<1x128xf32>
    %12 = vector.broadcast %11 : vector<1x128xf32> to vector<9x128xf32>
    %13 = arith.subf %3, %12 : vector<9x128xf32>
    %14 = math.exp %13 : vector<9x128xf32>
    %cst_4 = arith.constant dense<0.000000e+00> : vector<128xf32>
    %15 = vector.multi_reduction <add>, %14, %cst_4 [0] : vector<9x128xf32> to vector<128xf32>
    %16 = vector.shape_cast %15 : vector<128xf32> to vector<1x128xf32>
    %17 = tpu.reciprocal %16 {approx = true} : vector<1x128xf32> -> vector<1x128xf32>
    %18 = arith.mulf %17, %9 : vector<1x128xf32>
    %19 = vector.broadcast %18 : vector<1x128xf32> to vector<9x128xf32>
    %20 = arith.mulf %14, %19 : vector<9x128xf32>
    %21 = tpu.iota {dimensions = array<i32: 0>} : vector<9x128xi32>
    %22 = vector.broadcast %5 : vector<1x128xi32> to vector<9x128xi32>
    %23 = arith.cmpi eq, %21, %22 : vector<9x128xi32>
    %24 = arith.extui %23 : vector<9x128xi1> to vector<9x128xi32>
    %25 = arith.sitofp %24 : vector<9x128xi32> to vector<9x128xf32>
    %c0_5 = arith.constant 0 : index
    %c0_6 = arith.constant 0 : index
    %c0_7 = arith.constant 0 : index
    %c0_8 = arith.constant 0 : index
    %26 = vector.load %arg3[%c0_5, %c0_6, %c0_7, %c0_8] : memref<1x3x9x128xf32, #tpu.memory_space<vmem>>, vector<1x1x9x128xf32>
    %27 = vector.shape_cast %26 : vector<1x1x9x128xf32> to vector<9x128xf32>
    %28 = arith.mulf %25, %20 : vector<9x128xf32>
    %29 = arith.addf %27, %28 : vector<9x128xf32>
    %c0_9 = arith.constant 0 : index
    %c0_10 = arith.constant 0 : index
    %c0_11 = arith.constant 0 : index
    %c0_12 = arith.constant 0 : index
    %30 = vector.load %arg3[%c0_9, %c0_10, %c0_11, %c0_12] : memref<1x3x9x128xf32, #tpu.memory_space<vmem>>, vector<1x1x9x128xf32>
    %31 = vector.shape_cast %30 : vector<1x1x9x128xf32> to vector<9x128xf32>
    %32 = vector.shape_cast %29 : vector<9x128xf32> to vector<1x1x9x128xf32>
    tpu.vector_store %arg3[%c0_9, %c0_10, %c0_11, %c0_12], %32 {strides = array<i32>} : memref<1x3x9x128xf32, #tpu.memory_space<vmem>>, vector<1x1x9x128xf32>,
    %c0_13 = arith.constant 0 : index
    %c1 = arith.constant 1 : index
    %c0_14 = arith.constant 0 : index
    %c0_15 = arith.constant 0 : index
    %33 = vector.load %arg3[%c0_13, %c1, %c0_14, %c0_15] : memref<1x3x9x128xf32, #tpu.memory_space<vmem>>, vector<1x1x9x128xf32>
    %34 = vector.shape_cast %33 : vector<1x1x9x128xf32> to vector<9x128xf32>
    %35 = arith.addf %34, %20 : vector<9x128xf32>
    %c0_16 = arith.constant 0 : index
    %c1_17 = arith.constant 1 : index
    %c0_18 = arith.constant 0 : index
    %c0_19 = arith.constant 0 : index
    %36 = vector.load %arg3[%c0_16, %c1_17, %c0_18, %c0_19] : memref<1x3x9x128xf32, #tpu.memory_space<vmem>>, vector<1x1x9x128xf32>
    %37 = vector.shape_cast %36 : vector<1x1x9x128xf32> to vector<9x128xf32>
    %38 = vector.shape_cast %35 : vector<9x128xf32> to vector<1x1x9x128xf32>
    tpu.vector_store %arg3[%c0_16, %c1_17, %c0_18, %c0_19], %38 {strides = array<i32>} : memref<1x3x9x128xf32, #tpu.memory_space<vmem>>, vector<1x1x9x128xf32>,
    %c0_20 = arith.constant 0 : index
    %c2 = arith.constant 2 : index
    %c0_21 = arith.constant 0 : index
    %c0_22 = arith.constant 0 : index
    %39 = vector.load %arg3[%c0_20, %c2, %c0_21, %c0_22] : memref<1x3x9x128xf32, #tpu.memory_space<vmem>>, vector<1x1x9x128xf32>
    %40 = vector.shape_cast %39 : vector<1x1x9x128xf32> to vector<9x128xf32>
    %41 = arith.addf %40, %25 : vector<9x128xf32>
    %c0_23 = arith.constant 0 : index
    %c2_24 = arith.constant 2 : index
    %c0_25 = arith.constant 0 : index
    %c0_26 = arith.constant 0 : index
    %42 = vector.load %arg3[%c0_23, %c2_24, %c0_25, %c0_26] : memref<1x3x9x128xf32, #tpu.memory_space<vmem>>, vector<1x1x9x128xf32>
    %43 = vector.shape_cast %42 : vector<1x1x9x128xf32> to vector<9x128xf32>
    %44 = vector.shape_cast %41 : vector<9x128xf32> to vector<1x1x9x128xf32>
    tpu.vector_store %arg3[%c0_23, %c2_24, %c0_25, %c0_26], %44 {strides = array<i32>} : memref<1x3x9x128xf32, #tpu.memory_space<vmem>>, vector<1x1x9x128xf32>,
    return
  }
  func.func @transform_0(%arg0: i32, %arg1: i32) -> (i32, i32) {
    %c1_i32 = arith.constant 1 : i32
    %0 = arith.muli %arg0, %c1_i32 : i32
    %1 = arith.addi %0, %arg1 : i32
    %c0_i32 = arith.constant 0 : i32
    %c0_i32_0 = arith.constant 0 : i32
    return %c0_i32, %1 : i32, i32
  }
  func.func @transform_1(%arg0: i32, %arg1: i32) -> (i32, i32, i32, i32) {
    %c0_i32 = arith.constant 0 : i32
    %c0_i32_0 = arith.constant 0 : i32
    %c0_i32_1 = arith.constant 0 : i32
    %c0_i32_2 = arith.constant 0 : i32
    return %arg0, %c0_i32, %c0_i32_0, %c0_i32_1 : i32, i32, i32, i32
  }
}

</mosaic_0001>

<llo_original>
// kernel: tpu_custom_call.1
$region0: #{tpu_custom_call.1}
  #allocation0 [shape = 'u32[]', space=smem, size = 0x4, offset = 0x4, fixed_abs, tag = 'smem constant byte address 0x4 - core index']
  #allocation1 [shape = 'u32[144,128]{1,0:T(1,128)}', space=vmem, size = 0x12000, scoped, tag = 'internal scratch']
  %s0 = inlined_call_operand.hbm [shape: f32[10,128], index: 0, kind: input, shape index: {}]
  %s1 = inlined_call_operand.vmem [shape: f32[1,3,9,128], index: 1, kind: output, shape index: {}]
  %s2 = sld [smem:[#allocation0]]
  $region22: #{tpu_custom_call.1} parent=0
    _
  %s4 = ssub.s32 1, %s2
  %s5 = scalar_select 0, %s4, %s2
  $region1: #{tpu_custom_call.1} parent=0
    #allocation2 [shape = 'u8[8192]{0}', space=vmem, size = 0x2000, scoped, tag = 'input window, operand 0, single buffered']
    #allocation3 [shape = 's32[1]{0}', space=sflag, size = 0x4, scoped, tag = 'scoped memory for tpu_custom_call.1']
    %6 = vsyncpa [#allocation3], 0
    // Predicated region
    $region2: #{tpu_custom_call.1} parent=1 // pred_check
      _
    $region3: #{tpu_custom_call.1} parent=1 // pred_check_branch
      %8 = sbr.rel (0) target = $region5
    $region4: #{tpu_custom_call.1} parent=1 // pred_region
      %s9 = sadd.s32 0, 0
      %s11 = ssub.s32 256, 256
      %12 = vsyncadd [#allocation3], %s11
      %s13 = smul.addr %s9, 128
      %s14 = scalar_lea.hbm %s0, %s13
      %s15 = sshll.u32 [#allocation2], 4
      %s16 = int_to_ptr.vmem [resolvable:$true] %s15
      %21 = dma.hbm_to_vmem [thread:$0]  %s14, 256, %s16, [#allocation3], 128, 128, 8
    $region5: #{tpu_custom_call.1} parent=1 // pred_fallthru
      _
    // Predicated region
    $region6: #{tpu_custom_call.1} parent=1 // pred_check
      _
    $region7: #{tpu_custom_call.1} parent=1 // pred_check_branch
      %23 = sbr.rel (0) target = $region9
    $region8: #{tpu_custom_call.1} parent=1 // pred_region
      %24 = dma.done [#allocation3], 256
    $region9: #{tpu_custom_call.1} parent=1 // pred_fallthru
      _
    %s25 = sadd.s32 0, 0
    %p26 = scmp.eq.s32.totalorder 0, 0
    // Predicated region
    $region10: #{tpu_custom_call.1} parent=1 // pred_check
      %p27 = pneg %p26
    $region11: #{tpu_custom_call.1} parent=1 // pred_check_branch
      %29 = sbr.rel (%p27) target = $region13
    $region12: #{tpu_custom_call.1} parent=1 // pred_region
      %30 = vst [vmem:[%s1] sm:$0xff] 0.0
      %31 = vst [vmem:[%s1 + $0x8] sm:$0x1] 0.0
      %32 = vst [vmem:[%s1 + $0x10] sm:$0xff] 0.0
      %33 = vst [vmem:[%s1 + $0x18] sm:$0x1] 0.0
      %34 = vst [vmem:[%s1 + $0x20] sm:$0xff] 0.0
      %35 = vst [vmem:[%s1 + $0x28] sm:$0x1] 0.0
    $region13: #{tpu_custom_call.1} parent=1 // pred_fallthru
      _
    %v36 = vld [vmem:[#allocation2] sm:$0xff]
    %v37 = vld [vmem:[#allocation2 + $0x8] sm:$0x1]
    %v38 = vld [vmem:[#allocation2 + $0x9] sm:$0x1]
    %vm40 = vcmp.ge.s32.totalorder %v38, 0
    %v41 = vsel %vm40, 1, 0
    %v42 = vcvt.s32.f32 %v41
    %vm43 = vcmask 1040384
    %v44 = vsel %vm43, %v37, -inf
    %v45 = vmax.f32 %v36, %v44
    %v46 = vrot.slane %v45, 4
    %v47 = vmax.f32 %v45, %v46
    %v48 = vrot.slane %v47, 2
    %v49 = vmax.f32 %v47, %v48
    %v50 = vrot.slane %v49, 1
    %v51 = vmax.f32 %v49, %v50
    %v52 = vsub.f32 %v36, %v51
    %v53 = vsub.f32 %v37, %v51
    %v54 = vmul.f32 %v52, 1.442695
    %v55 = vpow.pop %v54
    %v56 = vmul.f32 %v53, 1.442695
    %v57 = vpow.pop %v56
    %v58 = vsel %vm43, %v57, 0.0
    %v59 = vadd.f32 %v55, %v58
    %v60 = vrot.slane %v59, 4
    %v61 = vadd.f32 %v59, %v60
    %v62 = vrot.slane %v61, 2
    %v63 = vadd.f32 %v61, %v62
    %v64 = vrot.slane %v63, 1
    %v65 = vadd.f32 %v63, %v64
    %v66 = vrcp.pop %v65
    %v67 = vmul.f32 %v66, %v42
    %v68 = vlaneseq
    %v69 = vshrl.u32 %v68, 7
    %v70 = vsub.s32 0, %v69
    %v71 = vrot.slane %v67, %v70
    %v72 = vmul.f32 %v55, %v71
    %v73 = vmul.f32 %v57, %v71
    %v74 = vlaneseq
    %v75 = vshrl.u32 %v74, 7
    %v76 = vadd.s32 %v75, 8
    %v77 = vlaneseq
    %v78 = vshrl.u32 %v77, 7
    %v79 = vsub.s32 0, %v78
    %v80 = vrot.slane %v38, %v79
    %vm81 = vcmp.eq.s32.totalorder %v75, %v80
    %vm82 = vcmp.eq.s32.totalorder %v76, %v80
    %v83 = vsel %vm81, 1, 0
    %v84 = vsel %vm82, 1, 0
    %v85 = vcvt.s32.f32 %v83
    %v86 = vcvt.s32.f32 %v84
    %v87 = vld [vmem:[%s1] sm:$0xff]
    %v88 = vld [vmem:[%s1 + $0x8] sm:$0x1]
    %v89 = vmul.f32 %v85, %v72
    %v90 = vmul.f32 %v86, %v73
    %v91 = vadd.f32 %v87, %v89
    %v92 = vadd.f32 %v88, %v90
    %93 = vst [vmem:[%s1] sm:$0xff] %v91
    %94 = vst [vmem:[%s1 + $0x8] sm:$0x1] %v92
    %s95 = scalar_lea.vmem %s1, 16
    %v96 = vld [vmem:[%s95] sm:$0xff]
    %v97 = vld [vmem:[%s95 + $0x8] sm:$0x1]
    %v98 = vadd.f32 %v96, %v72
    %v99 = vadd.f32 %v97, %v73
    %100 = vst [vmem:[%s95] sm:$0xff] %v98
    %101 = vst [vmem:[%s95 + $0x8] sm:$0x1] %v99
    %s102 = scalar_lea.vmem %s1, 32
    %v103 = vld [vmem:[%s102] sm:$0xff]
    %v104 = vld [vmem:[%s102 + $0x8] sm:$0x1]
    %v105 = vadd.f32 %v103, %v85
    %v106 = vadd.f32 %v104, %v86
    %107 = vst [vmem:[%s102] sm:$0xff] %v105
    %108 = vst [vmem:[%s102 + $0x8] sm:$0x1] %v106
    // Predicated region
    $region14: #{tpu_custom_call.1} parent=1 // pred_check
      _
    $region15: #{tpu_custom_call.1} parent=1 // pred_check_branch
      %110 = sbr.rel (0) target = $region17
    $region16: #{tpu_custom_call.1} parent=1 // pred_region
      _
    $region17: #{tpu_custom_call.1} parent=1 // pred_fallthru
      _
    // Predicated region
    $region18: #{tpu_custom_call.1} parent=1 // pred_check
      _
    $region19: #{tpu_custom_call.1} parent=1 // pred_check_branch
      %112 = sbr.rel (0) target = $region21
    $region20: #{tpu_custom_call.1} parent=1 // pred_region
      _
    $region21: #{tpu_custom_call.1} parent=1 // pred_fallthru
      _
    %113 = vsyncpa [#allocation3], 1

</llo_original>
